<compile_context>
chip_gen: v7x
topology: tpu7x:2x2x1
jax: 0.10.0
libtpu: 0.0.40
codegen_flags: <defaults>
</compile_context>

<pallas_src>
import math

import jax
import jax.numpy as jnp
from jax.experimental import pallas as pl
from jax.experimental.pallas import tpu as pltpu


# VMEM budgeting: tiles are sized against _VMEM_TILE_BUDGET and the scoped
# VMEM limit is raised to _VMEM_LIMIT_BYTES.  32 MiB is <= the physical VMEM
# of every current chip (v5e/v6e: 128 MiB, v7x: 64 MiB), so it is safe to
# request unconditionally; 24 MiB of tile budget leaves headroom for the
# VMEM-resident weights/biases and compiler scratch.
_VMEM_LIMIT_BYTES = 32 * 1024 * 1024
_VMEM_TILE_BUDGET = 24 * 1024 * 1024
_LANES = 128
_SUBLANES = 8


def _round_up(x, m):
    return -(-x // m) * m


def _pick_tile_rows(rows_total, in_cols, out_cols, itemsize):
    """Rows per grid step, derived from a VMEM budget.

    bytes/step ~= 2 (double buffer) * tile_rows * (in_cols + out_cols) * itemsize,
    with columns rounded up to the 128-lane VMEM tile width.  For large inputs
    we keep at least two grid steps so dimension_semantics=("parallel",) can
    shard the batch across both TensorCores of a v7x chip; for small inputs a
    single step avoids per-step overhead (~0.35us) — v5e/v6e have one TC anyway.
    """
    in_cols = _round_up(in_cols, _LANES)
    out_cols = _round_up(out_cols, _LANES)
    per_row = 2 * (in_cols + out_cols) * itemsize
    tile = max(_SUBLANES, _VMEM_TILE_BUDGET // per_row)
    tile = min(tile, rows_total)
    if rows_total >= 1024:  # big enough that a 2-way split costs ~nothing on 1-TC chips
        tile = min(tile, pl.cdiv(rows_total, 2))
    if tile < rows_total:
        tile = max(_SUBLANES, (tile // _SUBLANES) * _SUBLANES)
    return tile


# ---------------------------------------------------------------------------
# Kernels
# ---------------------------------------------------------------------------
def _value_proj_kernel(x_ref, w_ref, b_ref, out_ref):
    """out = x @ W + b.  Used for both the packed lane-dense layout and the
    generic layout; only the shapes presented by the BlockSpecs differ."""
    acc = jnp.dot(x_ref[...], w_ref[...], preferred_element_type=jnp.float32)
    out_ref[...] = (acc + b_ref[...]).astype(out_ref.dtype)


def _fused_qkv_attention_kernel(x_ref, wqkv_ref, bqkv_ref, out_ref):
    """Debug / fidelity path: keeps the (mathematically dead) q/k/softmax math,
    with Wq/Wk/Wv pre-fused into a single (F, 3H) matmul."""
    h = out_ref.shape[-1]
    qkv = jnp.dot(x_ref[...], wqkv_ref[...],
                  preferred_element_type=jnp.float32) + bqkv_ref[...]
    q = qkv[:, :h]
    k = qkv[:, h:2 * h]
    v = qkv[:, 2 * h:]
    inv_sqrt_dk = 1.0 / math.sqrt(float(h))
    scores = jnp.sum(q * k, axis=-1, keepdims=True) * inv_sqrt_dk     # (B, 1)
    m = jnp.max(scores, axis=-1, keepdims=True)
    e = jnp.exp(scores - m)
    weights = e * pl.reciprocal(jnp.sum(e, axis=-1, keepdims=True), approx=False)
    out_ref[...] = (weights * v).astype(out_ref.dtype)


# ---------------------------------------------------------------------------
# Wrapper
# ---------------------------------------------------------------------------
def fuse_qkv_params(wq, bq, wk, bk, wv, bv):
    """Pre-fuse the Q/K/V projections into one (F, 3H) weight / (1, 3H) bias.
    Call once (outside the per-step forward) so the concat is not re-done per call."""
    wqkv = jnp.concatenate([wq, wk, wv], axis=1)
    bqkv = jnp.concatenate([bq, bk, bv], axis=1).astype(jnp.float32)
    return wqkv, bqkv


def attention_forward(x, wq, bq, wk, bk, wv, bv, *,
                      keep_attention_math=False, wqkv=None, bqkv=None,
                      interpret=False):
    """Forward pass of the Attention module.

    x: (B, F).  Weights are stored transposed, (F, H); biases are (1, H).
    keep_attention_math: run the fused-QKV debug path that keeps the q/k/softmax
      computation for fidelity checks (pass pre-fused wqkv/bqkv to avoid the
      per-call concat).
    """
    B, F = x.shape
    H = wv.shape[1]
    out_dtype = x.dtype
    itemsize = jnp.dtype(out_dtype).itemsize

    cparams = pltpu.CompilerParams(
        dimension_semantics=("parallel",),
        vmem_limit_bytes=_VMEM_LIMIT_BYTES,
    )

    # -------------------------------------------------------------------
    # Debug / fidelity path (full attention math, fused (F, 3H) projection).
    # -------------------------------------------------------------------
    if keep_attention_math:
        if wqkv is None or bqkv is None:
            wqkv, bqkv = fuse_qkv_params(wq, bq, wk, bk, wv, bv)
        tile = _pick_tile_rows(B, F, 3 * H, itemsize)
        return pl.pallas_call(
            _fused_qkv_attention_kernel,
            out_shape=jax.ShapeDtypeStruct((B, H), out_dtype),
            grid=(pl.cdiv(B, tile),),
            in_specs=[pl.BlockSpec((tile, F), lambda i: (i, 0)),
                      pl.BlockSpec((F, 3 * H), lambda i: (0, 0)),
                      pl.BlockSpec((1, 3 * H), lambda i: (0, 0))],
            out_specs=pl.BlockSpec((tile, H), lambda i: (i, 0)),
            compiler_params=cparams,
            interpret=interpret,
        )(x, wqkv, bqkv)

    # -------------------------------------------------------------------
    # Fast path (exact): out = x @ Wv + bv.
    # -------------------------------------------------------------------
    pack = 128 // F if (0 < F <= 128 and 128 % F == 0) else 1
    if pack > 1 and B % pack == 0:
        # Lane-dense packed layout:
        #   x  (B, F)      -> xp (B/p, p*F=128)      (free row-major re-label)
        #   Wv (F, H)      -> W_big = kron(I_p, Wv)  (p*F, p*H) block-diagonal
        #   out_packed (B/p, p*H) -> out (B, H)      (free row-major re-label)
        # Every x load fills all 128 lanes; every output store is a full-width
        # vst (last dim p*H is a multiple of H and >= 128 when H*p >= 128).
        rows = B // pack
        in_cols = pack * F          # == 128
        out_cols = pack * H
        xp = x.reshape(rows, in_cols)
        w_big = jnp.kron(jnp.eye(pack, dtype=wv.dtype), wv)       # (128, p*H)
        b_big = jnp.tile(bv.astype(jnp.float32), (1, pack))        # (1, p*H)

        tile = _pick_tile_rows(rows, in_cols, out_cols, itemsize)
        out_packed = pl.pallas_call(
            _value_proj_kernel,
            out_shape=jax.ShapeDtypeStruct((rows, out_cols), out_dtype),
            grid=(pl.cdiv(rows, tile),),
            in_specs=[pl.BlockSpec((tile, in_cols), lambda i: (i, 0)),
                      pl.BlockSpec((in_cols, out_cols), lambda i: (0, 0)),
                      pl.BlockSpec((1, out_cols), lambda i: (0, 0))],
            out_specs=pl.BlockSpec((tile, out_cols), lambda i: (i, 0)),
            compiler_params=cparams,
            interpret=interpret,
        )(xp, w_big, b_big)
        return out_packed.reshape(B, H)

    # Generic fallback (any F / B): plain (tile, F) @ (F, H) with resident weights.
    tile = _pick_tile_rows(B, F, H, itemsize)
    return pl.pallas_call(
        _value_proj_kernel,
        out_shape=jax.ShapeDtypeStruct((B, H), out_dtype),
        grid=(pl.cdiv(B, tile),),
        in_specs=[pl.BlockSpec((tile, F), lambda i: (i, 0)),
                  pl.BlockSpec((F, H), lambda i: (0, 0)),
                  pl.BlockSpec((1, H), lambda i: (0, 0))],
        out_specs=pl.BlockSpec((tile, H), lambda i: (i, 0)),
        compiler_params=cparams,
        interpret=interpret,
    )(x, wv, bv)


# ---------------------------------------------------------------------------
# Params / reference
# ---------------------------------------------------------------------------
def init_params(key, in_features, hidden_dim):
    """Deterministic init mirroring nn.Linear (uniform(-1/sqrt(F), 1/sqrt(F)))."""
    bound = 1.0 / math.sqrt(in_features)
    keys = jax.random.split(key, 6)

    def u(k, shape):
        return jax.random.uniform(k, shape, jnp.float32, -bound, bound)

    # Weights stored transposed: (in_features, hidden_dim).
    wq = u(keys[0], (in_features, hidden_dim)); bq = u(keys[1], (1, hidden_dim))
    wk = u(keys[2], (in_features, hidden_dim)); bk = u(keys[3], (1, hidden_dim))
    wv = u(keys[4], (in_features, hidden_dim)); bv = u(keys[5], (1, hidden_dim))
    return wq, bq, wk, bk, wv, bv


def reference_forward(x, wq, bq, wk, bk, wv, bv):
    """Pure-JAX reference replicating the PyTorch module exactly."""
    xe = x[:, None, :]                                   # (B, 1, F)
    q = xe @ wq + bq                                     # (B, 1, H)
    k = xe @ wk + bk
    v = xe @ wv + bv
    d_k = q.shape[-1]
    scores = jnp.matmul(q, jnp.swapaxes(k, -2, -1)) / jnp.sqrt(jnp.float32(d_k))
    weights = jax.nn.softmax(scores, axis=-1)
    out = jnp.matmul(weights, v)
    return out[:, 0, :]                                  # (B, H)


if __name__ == "__main__":
    key = jax.random.PRNGKey(0)
    k_x1, k_p1, k_x2, k_p2 = jax.random.split(key, 4)

    # --- Shape that takes the lane-dense packed path (F | 128, B % (128/F) == 0).
    B1, F1, H1 = 64, 16, 32
    x1 = jax.random.normal(k_x1, (B1, F1), jnp.float32)
    params1 = init_params(k_p1, F1, H1)
    ref1 = reference_forward(x1, *params1)

    out1 = jax.block_until_ready(attention_forward(x1, *params1))
    assert out1.shape == (B1, H1), out1.shape
    assert jnp.allclose(out1, ref1, atol=1e-5, rtol=1e-5), \
        f"packed fast path max err {jnp.max(jnp.abs(out1 - ref1))}"

    # --- Shape that takes the generic fallback path (F does not divide 128).
    B2, F2, H2 = 12, 24, 32
    x2 = jax.random.normal(k_x2, (B2, F2), jnp.float32)
    params2 = init_params(k_p2, F2, H2)
    ref2 = reference_forward(x2, *params2)

    out2 = jax.block_until_ready(attention_forward(x2, *params2))
    assert out2.shape == (B2, H2), out2.shape
    assert jnp.allclose(out2, ref2, atol=1e-5, rtol=1e-5), \
        f"generic fast path max err {jnp.max(jnp.abs(out2 - ref2))}"

    # --- Debug path keeping the full q/k/softmax math (pre-fused QKV weights).
    wqkv, bqkv = fuse_qkv_params(*params1)
    out_dbg = jax.block_until_ready(
        attention_forward(x1, *params1, keep_attention_math=True,
                          wqkv=wqkv, bqkv=bqkv))
    assert out_dbg.shape == (B1, H1), out_dbg.shape
    assert jnp.allclose(out_dbg, ref1, atol=1e-5, rtol=1e-5), \
        f"debug path max err {jnp.max(jnp.abs(out_dbg - ref1))}"

    print("KERNEL_OK")
</pallas_src>

<mosaic_0001>
module attributes {stable_mosaic.version = 11 : i64} {
  func.func @_value_proj_kernel(%arg0: i32, %arg1: memref<8x128xf32, #tpu.memory_space<vmem>>, %arg2: memref<128x256xf32, #tpu.memory_space<vmem>>, %arg3: memref<1x256xf32, #tpu.memory_space<vmem>>, %arg4: memref<8x256xf32, #tpu.memory_space<vmem>>) attributes {dimension_semantics = [#tpu.dimension_semantics<parallel>], iteration_bounds = array<i64: 1>, scalar_prefetch = 0 : i64, scratch_operands = 0 : i64, tpu.core_type = #tpu.core_type<tc>, window_params = [{transform_indices = @transform_0, window_bounds = array<i64: 8, 128>}, {pipeline_mode = #tpu.pipeline_mode<synchronous>, transform_indices = @transform_1, window_bounds = array<i64: 128, 256>}, {pipeline_mode = #tpu.pipeline_mode<synchronous>, transform_indices = @transform_2, window_bounds = array<i64: 1, 256>}, {transform_indices = @transform_3, window_bounds = array<i64: 8, 256>}]} {
    %c0 = arith.constant 0 : index
    %c0_0 = arith.constant 0 : index
    %0 = vector.load %arg1[%c0, %c0_0] : memref<8x128xf32, #tpu.memory_space<vmem>>, vector<8x128xf32>
    %c0_1 = arith.constant 0 : index
    %c0_2 = arith.constant 0 : index
    %1 = vector.load %arg2[%c0_1, %c0_2] : memref<128x256xf32, #tpu.memory_space<vmem>>, vector<128x256xf32>
    %cst = arith.constant dense<0.000000e+00> : vector<8x256xf32>
    %2 = tpu.matmul %0, %1, %cst {dimension_numbers = #tpu.dot_dimension_numbers<[1], [0], [0], [1], [0, 0, 1, 1], [], []>} : vector<8x128xf32>, vector<128x256xf32>, vector<8x256xf32> -> vector<8x256xf32>
    %c0_3 = arith.constant 0 : index
    %c0_4 = arith.constant 0 : index
    %3 = vector.load %arg3[%c0_3, %c0_4] : memref<1x256xf32, #tpu.memory_space<vmem>>, vector<1x256xf32>
    %4 = vector.broadcast %3 : vector<1x256xf32> to vector<8x256xf32>
    %5 = arith.addf %2, %4 : vector<8x256xf32>
    %c0_5 = arith.constant 0 : index
    %c0_6 = arith.constant 0 : index
    %6 = vector.load %arg4[%c0_5, %c0_6] : memref<8x256xf32, #tpu.memory_space<vmem>>, vector<8x256xf32>
    tpu.vector_store %arg4[%c0_5, %c0_6], %5 {strides = array<i32>} : memref<8x256xf32, #tpu.memory_space<vmem>>, vector<8x256xf32>,
    return
  }
  func.func @transform_0(%arg0: i32) -> (i32, i32) {
    %c0_i32 = arith.constant 0 : i32
    %c0_i32_0 = arith.constant 0 : i32
    return %arg0, %c0_i32 : i32, i32
  }
  func.func @transform_1(%arg0: i32) -> (i32, i32) {
    %c0_i32 = arith.constant 0 : i32
    %c0_i32_0 = arith.constant 0 : i32
    %c0_i32_1 = arith.constant 0 : i32
    return %c0_i32, %c0_i32_0 : i32, i32
  }
  func.func @transform_2(%arg0: i32) -> (i32, i32) {
    %c0_i32 = arith.constant 0 : i32
    %c0_i32_0 = arith.constant 0 : i32
    %c0_i32_1 = arith.constant 0 : i32
    return %c0_i32, %c0_i32_0 : i32, i32
  }
  func.func @transform_3(%arg0: i32) -> (i32, i32) {
    %c0_i32 = arith.constant 0 : i32
    %c0_i32_0 = arith.constant 0 : i32
    return %arg0, %c0_i32 : i32, i32
  }
}

</mosaic_0001>

<llo_original>
// kernel: tpu_custom_call.1
$region0: #{tpu_custom_call.1}
  #allocation0 [shape = 'u32[]', space=smem, size = 0x4, offset = 0x4, fixed_abs, tag = 'smem constant byte address 0x4 - core index']
  #allocation1 [shape = 'u32[144,128]{1,0:T(1,128)}', space=vmem, size = 0x12000, scoped, tag = 'internal scratch']
  %s0 = inlined_call_operand.hbm [shape: f32[8,128], index: 0, kind: input, shape index: {}]
  %s1 = inlined_call_operand.hbm [shape: f32[128,256], index: 1, kind: input, shape index: {}]
  %s2 = inlined_call_operand.vmem [shape: f32[1,256], index: 2, kind: input, shape index: {}]
  %s3 = inlined_call_operand.hbm [shape: f32[8,256], index: 3, kind: output, shape index: {}]
  %s4 = sld [smem:[#allocation0]]
  $region30: #{tpu_custom_call.1} parent=0
    _
  %s6 = ssub.s32 1, %s4
  %s7 = scalar_select 0, %s6, %s4
  $region1: #{tpu_custom_call.1} parent=0
    #allocation2 [shape = 'u8[4096]{0}', space=vmem, size = 0x1000, scoped, tag = 'input window, operand 0, single buffered']
    #allocation3 [shape = 's32[1]{0}', space=sflag, size = 0x4, scoped, tag = 'scoped memory for tpu_custom_call.1']
    #allocation4 [shape = 's32[1]{0}', space=sflag, size = 0x4, scoped, tag = 'scoped memory for tpu_custom_call.1']
    #allocation5 [shape = 'u8[131072]{0}', space=vmem, size = 0x20000, scoped, tag = 'input window, operand 1, single buffered']
    #allocation6 [shape = 's32[1]{0}', space=sflag, size = 0x4, scoped, tag = 'scoped memory for tpu_custom_call.1']
    #allocation7 [shape = 'u8[8192]{0}', space=vmem, size = 0x2000, scoped, tag = 'output window, operand 0, single buffered']
    %8 = vsyncpa [#allocation3], 0
    %9 = vsyncpa [#allocation6], 0
    %10 = vsyncpa [#allocation4], 0
    // Predicated region
    $region2: #{tpu_custom_call.1} parent=1 // pred_check
      _
    $region3: #{tpu_custom_call.1} parent=1 // pred_check_branch
      %12 = sbr.rel (0) target = $region5
    $region4: #{tpu_custom_call.1} parent=1 // pred_region
      %s14 = ssub.s32 128, 128
      %15 = vsyncadd [#allocation3], %s14
      %s17 = sshll.u32 [#allocation2], 4
      %s18 = int_to_ptr.vmem [resolvable:$true] %s17
      %20 = dma.hbm_to_vmem [thread:$0]  %s0, 128, %s18, [#allocation3]
    $region5: #{tpu_custom_call.1} parent=1 // pred_fallthru
      _
    // Predicated region
    $region6: #{tpu_custom_call.1} parent=1 // pred_check
      _
    $region7: #{tpu_custom_call.1} parent=1 // pred_check_branch
      %22 = sbr.rel (0) target = $region9
    $region8: #{tpu_custom_call.1} parent=1 // pred_region
      %s24 = ssub.s32 4096, 4096
      %25 = vsyncadd [#allocation6], %s24
      %s26 = sshll.u32 [#allocation5], 4
      %s27 = int_to_ptr.vmem [resolvable:$true] %s26
      %32 = dma.hbm_to_vmem [thread:$0]  %s1, 4096, %s27, [#allocation6], 256, 256, 16
    $region9: #{tpu_custom_call.1} parent=1 // pred_fallthru
      _
    // Predicated region
    $region10: #{tpu_custom_call.1} parent=1 // pred_check
      _
    $region11: #{tpu_custom_call.1} parent=1 // pred_check_branch
      %34 = sbr.rel (0) target = $region13
    $region12: #{tpu_custom_call.1} parent=1 // pred_region
      _
    $region13: #{tpu_custom_call.1} parent=1 // pred_fallthru
      _
    // Predicated region
    $region14: #{tpu_custom_call.1} parent=1 // pred_check
      _
    $region15: #{tpu_custom_call.1} parent=1 // pred_check_branch
      %36 = sbr.rel (0) target = $region17
    $region16: #{tpu_custom_call.1} parent=1 // pred_region
      %37 = dma.done [#allocation3], 128
    $region17: #{tpu_custom_call.1} parent=1 // pred_fallthru
      _
    // Predicated region
    $region18: #{tpu_custom_call.1} parent=1 // pred_check
      _
    $region19: #{tpu_custom_call.1} parent=1 // pred_check_branch
      %39 = sbr.rel (0) target = $region21
    $region20: #{tpu_custom_call.1} parent=1 // pred_region
      %40 = dma.done [#allocation6], 4096
    $region21: #{tpu_custom_call.1} parent=1 // pred_fallthru
      _
    %v41 = vld [vmem:[#allocation2] sm:$0xff]
    %v42 = vld [vmem:[#allocation5] sm:$0xff]
    %v43 = vld [vmem:[#allocation5 + $0x8] sm:$0xff]
    %v44 = vld [vmem:[#allocation5 + $0x10] sm:$0xff]
    %v45 = vld [vmem:[#allocation5 + $0x18] sm:$0xff]
    %v46 = vld [vmem:[#allocation5 + $0x20] sm:$0xff]
    %v47 = vld [vmem:[#allocation5 + $0x28] sm:$0xff]
    %v48 = vld [vmem:[#allocation5 + $0x30] sm:$0xff]
    %v49 = vld [vmem:[#allocation5 + $0x38] sm:$0xff]
    %v50 = vld [vmem:[#allocation5 + $0x40] sm:$0xff]
    %v51 = vld [vmem:[#allocation5 + $0x48] sm:$0xff]
    %v52 = vld [vmem:[#allocation5 + $0x50] sm:$0xff]
    %v53 = vld [vmem:[#allocation5 + $0x58] sm:$0xff]
    %v54 = vld [vmem:[#allocation5 + $0x60] sm:$0xff]
    %v55 = vld [vmem:[#allocation5 + $0x68] sm:$0xff]
    %v56 = vld [vmem:[#allocation5 + $0x70] sm:$0xff]
    %v57 = vld [vmem:[#allocation5 + $0x78] sm:$0xff]
    %v58 = vld [vmem:[#allocation5 + $0x80] sm:$0xff]
    %v59 = vld [vmem:[#allocation5 + $0x88] sm:$0xff]
    %v60 = vld [vmem:[#allocation5 + $0x90] sm:$0xff]
    %v61 = vld [vmem:[#allocation5 + $0x98] sm:$0xff]
    %v62 = vld [vmem:[#allocation5 + $0xa0] sm:$0xff]
    %v63 = vld [vmem:[#allocation5 + $0xa8] sm:$0xff]
    %v64 = vld [vmem:[#allocation5 + $0xb0] sm:$0xff]
    %v65 = vld [vmem:[#allocation5 + $0xb8] sm:$0xff]
    %v66 = vld [vmem:[#allocation5 + $0xc0] sm:$0xff]
    %v67 = vld [vmem:[#allocation5 + $0xc8] sm:$0xff]
    %v68 = vld [vmem:[#allocation5 + $0xd0] sm:$0xff]
    %v69 = vld [vmem:[#allocation5 + $0xd8] sm:$0xff]
    %v70 = vld [vmem:[#allocation5 + $0xe0] sm:$0xff]
    %v71 = vld [vmem:[#allocation5 + $0xe8] sm:$0xff]
    %v72 = vld [vmem:[#allocation5 + $0xf0] sm:$0xff]
    %v73 = vld [vmem:[#allocation5 + $0xf8] sm:$0xff]
    %v74 = vld [vmem:[%s2] sm:$0x3]
    %v76 = vlaneseq
    %v77 = vshrl.u32 %v76, 7
    %v78 = vsub.s32 0, %v77
    %v79 = vrot.slane %v74, %v78
    %v80 = vlaneseq
    %v81 = vshrl.u32 %v80, 7
    %v82 = vsub.s32 1, %v81
    %v83 = vrot.slane %v74, %v82
    %86 = vmatprep.subr.mxu0 %v43
    %87 = vmatpush1.msra.mxu0 %v42
    %88 = vmatprep.subr.mxu0 %v45
    %89 = vmatpush1.msra.mxu0 %v44
    %90 = vmatprep.subr.mxu0 %v47
    %91 = vmatpush1.msra.mxu0 %v46
    %92 = vmatprep.subr.mxu0 %v49
    %93 = vmatpush1.msra.mxu0 %v48
    %94 = vmatprep.subr.mxu0 %v51
    %95 = vmatpush1.msra.mxu0 %v50
    %96 = vmatprep.subr.mxu0 %v53
    %97 = vmatpush1.msra.mxu0 %v52
    %98 = vmatprep.subr.mxu0 %v55
    %99 = vmatpush1.msra.mxu0 %v54
    %100 = vmatprep.subr.mxu0 %v57
    %101 = vmatpush1.msra.mxu0 %v56
    %102 = vmatprep.subr.mxu0 %v59
    %103 = vmatpush1.msra.mxu0 %v58
    %104 = vmatprep.subr.mxu0 %v61
    %105 = vmatpush1.msra.mxu0 %v60
    %106 = vmatprep.subr.mxu0 %v63
    %107 = vmatpush1.msra.mxu0 %v62
    %108 = vmatprep.subr.mxu0 %v65
    %109 = vmatpush1.msra.mxu0 %v64
    %110 = vmatprep.subr.mxu0 %v67
    %111 = vmatpush1.msra.mxu0 %v66
    %112 = vmatprep.subr.mxu0 %v69
    %113 = vmatpush1.msra.mxu0 %v68
    %114 = vmatprep.subr.mxu0 %v71
    %115 = vmatpush1.msra.mxu0 %v70
    %116 = vmatprep.subr.mxu0 %v73
    %117 = vmatpush1.msra.mxu0 %v72
    %118 = vmatprep.subr.mxu0 0.0
    %119 = vmatpush1.msra.mxu0 0.0
    %120 = vmatprep.subr.mxu0 0.0
    %121 = vmatpush1.msra.mxu0 0.0
    %122 = vmatprep.subr.mxu0 0.0
    %123 = vmatpush1.msra.mxu0 0.0
    %124 = vmatprep.subr.mxu0 0.0
    %125 = vmatpush1.msra.mxu0 0.0
    %126 = vmatprep.subr.mxu0 0.0
    %127 = vmatpush1.msra.mxu0 0.0
    %128 = vmatprep.subr.mxu0 0.0
    %129 = vmatpush1.msra.mxu0 0.0
    %130 = vmatprep.subr.mxu0 0.0
    %131 = vmatpush1.msra.mxu0 0.0
    %132 = vmatprep.subr.mxu0 0.0
    %133 = vmatpush1.msra.mxu0 0.0
    %134 = vmatprep.subr.mxu0 0.0
    %135 = vmatpush1.msra.mxu0 0.0
    %136 = vmatprep.subr.mxu0 0.0
    %137 = vmatpush1.msra.mxu0 0.0
    %138 = vmatprep.subr.mxu0 0.0
    %139 = vmatpush1.msra.mxu0 0.0
    %140 = vmatprep.subr.mxu0 0.0
    %141 = vmatpush1.msra.mxu0 0.0
    %142 = vmatprep.subr.mxu0 0.0
    %143 = vmatpush1.msra.mxu0 0.0
    %144 = vmatprep.subr.mxu0 0.0
    %145 = vmatpush1.msra.mxu0 0.0
    %146 = vmatprep.subr.mxu0 0.0
    %147 = vmatpush1.msra.mxu0 0.0
    %148 = vmatprep.subr.mxu0 0.0
    %149 = vmatpush1.msra.mxu0 0.0
    %150 = vmatprep.mubr.f32.mxu0 0.0
    %151 = vmatmul.mubr.f32.gmra.mrb[0].mxu0 %v41
    %v152 = vpop.f32.mrb[0].mxu0
    %v153 = vadd.f32 %v79, %v152
    %v154 = vpop.f32.mrb[0].mxu0
    %v155 = vadd.f32 %v83, %v154
    %156 = vdwg.mxu0
    %157 = vst [vmem:[#allocation7] sm:$0xff] %v153
    %158 = vst [vmem:[#allocation7 + $0x8] sm:$0xff] %v155
    // Predicated region
    $region22: #{tpu_custom_call.1} parent=1 // pred_check
      _
    $region23: #{tpu_custom_call.1} parent=1 // pred_check_branch
      %160 = sbr.rel (0) target = $region25
    $region24: #{tpu_custom_call.1} parent=1 // pred_region
      %s162 = ssub.s32 256, 256
      %163 = vsyncadd [#allocation4], %s162
      %s165 = sshll.u32 [#allocation7], 4
      %s166 = int_to_ptr.vmem [resolvable:$true] %s165
      %168 = dma.vmem_to_hbm [thread:$0]  %s166, 256, %s3, [#allocation4]
    $region25: #{tpu_custom_call.1} parent=1 // pred_fallthru
      _
    // Predicated region
    $region26: #{tpu_custom_call.1} parent=1 // pred_check
      _
    $region27: #{tpu_custom_call.1} parent=1 // pred_check_branch
      %170 = sbr.rel (0) target = $region29
    $region28: #{tpu_custom_call.1} parent=1 // pred_region
      %171 = dma.done [#allocation4], 256
    $region29: #{tpu_custom_call.1} parent=1 // pred_fallthru
      _
    %172 = vsyncpa [#allocation3], 1
    %173 = vsyncpa [#allocation6], 1
    %174 = vsyncpa [#allocation4], 1

</llo_original>
